<compile_context>
chip_gen: v5e
topology: v5e:2x2
jax: 0.10.0
libtpu: 0.0.40
codegen_flags: <defaults>
</compile_context>

<pallas_src>
import jax
import jax.numpy as jnp
from jax.experimental import pallas as pl
from jax.experimental.pallas import tpu as pltpu


LINEAR_LAYERS = [32, 64]   # hidden widths; full chain is 1 -> 32 -> 64 -> 1
NEG_SLOPE = 0.05


def _leaky_relu(x, slope=NEG_SLOPE):
    # For 0 < slope < 1: max(x, slope*x) == leaky_relu(x). 2 VALU ops per vreg.
    return jnp.maximum(x, slope * x)


def make_kernel(n_layers, use_bf16_matmul=False):
    """Build the fused MLP kernel for `n_layers` Linear layers (chain 1 -> ... -> 1)."""
    assert n_layers >= 2

    def kernel(x_ref, *refs):
        """
        x_ref:   (1, TILE_N)      batch slab, batch on the lane axis
        refs:    w0,b0, w1,b1, ..., w_{L-1},b_{L-1}, o_ref
                 w_l: (out_l, in_l) PyTorch layout, resident in VMEM
                 b_l: (out_l, 1)
        o_ref:   (1, TILE_N)
        """
        o_ref = refs[-1]
        wb = refs[:-1]

        x = x_ref[...].astype(jnp.float32)                # (1, TILE_N)

        # Layer 0: in_features == 1 -> outer product on the VPU (no MXU pass).
        w0 = wb[0][...].astype(jnp.float32)               # (h0, 1)
        b0 = wb[1][...].astype(jnp.float32)               # (h0, 1)
        h = _leaky_relu(w0 * x + b0)                      # (h0, TILE_N)

        # Middle layers: full-lane MXU matmuls (out, in) @ (in, TILE_N).
        for l in range(1, n_layers - 1):
            w = wb[2 * l][...]
            b = wb[2 * l + 1][...].astype(jnp.float32)
            if use_bf16_matmul:
                # Native bf16 MXU path (v6e/v7x); keep the f32 accumulator.
                hh = jnp.dot(w.astype(jnp.bfloat16), h.astype(jnp.bfloat16),
                             preferred_element_type=jnp.float32)
            else:
                hh = jnp.dot(w.astype(jnp.float32), h,
                             preferred_element_type=jnp.float32)
            h = _leaky_relu(hh + b)

        # Last layer (out_features == 1): VPU multiply + sublane reduction instead of an
        # M=1 MXU matmul (which would fill only 1/128 .. 1/256 of the result tile).
        wl = wb[2 * (n_layers - 1)][...].astype(jnp.float32)      # (1, h_last)
        bl = wb[2 * (n_layers - 1) + 1][...].astype(jnp.float32)  # (1, 1)
        y = jnp.sum(wl.reshape(-1, 1) * h, axis=0, keepdims=True) + bl   # (1, TILE_N)

        o_ref[...] = y.astype(o_ref.dtype)

    return kernel


def _choose_tiling(n, max_tile=8192):
    """Pick (tile_n, n_pad) for a lane-dense batch of n scalars.

    - minimal lane padding (multiple of 128),
    - at most ~max_tile lanes per grid step (fits all chips' scoped VMEM),
    - even step count when splitting (v7x megacore balance); a single step only for
      batches too small / ragged to split into equal 128-multiple halves.
    """
    n128 = pl.cdiv(n, 128) * 128
    steps = pl.cdiv(n128, max_tile)
    if steps > 1 or (n128 >= 256 and n128 % 256 == 0):
        steps = 2 * pl.cdiv(steps, 2)          # even number of steps
    tile_n = pl.cdiv(n128, steps * 128) * 128
    n_pad = steps * tile_n
    return tile_n, n_pad


def feature_transformer(x, params, *, max_tile=8192, use_bf16_matmul=False):
    """x: (N, 1) float32. params: list of (W (out,in), b (out,1)) in PyTorch layout."""
    N, F = x.shape
    assert F == 1
    n_layers = len(params)

    tile_n, n_pad = _choose_tiling(N, max_tile)

    # Lane-dense view of the batch; pad only the tail of the (1, N) row if needed.
    xt = x.reshape(1, N)
    if n_pad != N:
        xt = jnp.pad(xt, ((0, 0), (0, n_pad - N)))

    flat_params = []
    in_specs = [pl.BlockSpec((1, tile_n), lambda i: (0, i))]   # x slab
    for w, b in params:
        flat_params += [w, b]
        # Full-array blocks with constant index maps: weights stay resident in VMEM.
        in_specs += [pl.BlockSpec(w.shape, lambda i: (0, 0)),
                     pl.BlockSpec(b.shape, lambda i: (0, 0))]

    # Advisory cost estimate for XLA scheduling around the custom call.
    flops = n_pad * sum(2 * w.shape[0] * w.shape[1] for w, _ in params)
    bytes_accessed = (xt.size + n_pad) * 4 + sum(
        (w.size + b.size) * 4 for w, b in params)
    cost = pl.CostEstimate(flops=flops, transcendentals=0,
                           bytes_accessed=bytes_accessed)

    out = pl.pallas_call(
        make_kernel(n_layers, use_bf16_matmul=use_bf16_matmul),
        out_shape=jax.ShapeDtypeStruct((1, n_pad), x.dtype),
        grid_spec=pltpu.PrefetchScalarGridSpec(
            num_scalar_prefetch=0,
            grid=(n_pad // tile_n,),
            in_specs=in_specs,
            out_specs=pl.BlockSpec((1, tile_n), lambda i: (0, i)),
        ),
        compiler_params=pltpu.CompilerParams(
            dimension_semantics=("parallel",),
            vmem_limit_bytes=32 << 20),        # headroom on v5e's 16 MiB scoped default
        cost_estimate=cost,
    )(xt, *flat_params)

    return out.reshape(n_pad, 1)[:N]


def init_params(key, linear_layers):
    """PyTorch-default-like init (U[-1/sqrt(in), 1/sqrt(in)]).

    Returns list of (W (out,in), b (out,1)) for the chain 1 -> ... -> 1.
    """
    dims = [1] + list(linear_layers) + [1]
    params = []
    for fan_in, fan_out in zip(dims[:-1], dims[1:]):
        key, kw, kb = jax.random.split(key, 3)
        bound = 1.0 / (fan_in ** 0.5)
        w = jax.random.uniform(kw, (fan_out, fan_in), jnp.float32, -bound, bound)
        b = jax.random.uniform(kb, (fan_out, 1), jnp.float32, -bound, bound)
        params.append((w, b))
    return params


def reference_forward(x, params):
    """Plain-JAX reference in the standard (N, features) orientation."""
    h = x
    n = len(params)
    for idx, (w, b) in enumerate(params):
        h = h @ w.T + b.T
        if idx < n - 1:
            h = jnp.maximum(h, NEG_SLOPE * h)
    return h


if __name__ == "__main__":
    key = jax.random.PRNGKey(0)
    k_x, k_p = jax.random.split(key)

    params = init_params(k_p, LINEAR_LAYERS)
    run = jax.jit(feature_transformer)

    # Two small cases:
    #   N=2048 -> no padding, 2 lane-dense tiles of 1024 (megacore-shardable grid)
    #   N=300  -> ragged batch, minimal tail pad to 384 lanes, single grid step
    for n in (2048, 300):
        kx = jax.random.fold_in(k_x, n)
        x = jax.random.normal(kx, (n, 1), jnp.float32)
        out = jax.block_until_ready(run(x, params))
        ref = reference_forward(x, params)
        assert out.shape == (n, 1)
        assert jnp.allclose(out, ref, atol=1e-5, rtol=1e-5), f"mismatch vs reference at N={n}"

    print("KERNEL_OK")
</pallas_src>

<mosaic_0001>
module attributes {stable_mosaic.version = 11 : i64} {
  func.func @kernel(%arg0: i32, %arg1: memref<1x1024xf32, #tpu.memory_space<vmem>>, %arg2: memref<32x1xf32, #tpu.memory_space<vmem>>, %arg3: memref<32x1xf32, #tpu.memory_space<vmem>>, %arg4: memref<64x32xf32, #tpu.memory_space<vmem>>, %arg5: memref<64x1xf32, #tpu.memory_space<vmem>>, %arg6: memref<1x64xf32, #tpu.memory_space<vmem>>, %arg7: memref<1x1xf32, #tpu.memory_space<vmem>>, %arg8: memref<1x1024xf32, #tpu.memory_space<vmem>>) attributes {dimension_semantics = [#tpu.dimension_semantics<parallel>], iteration_bounds = array<i64: 2>, scalar_prefetch = 0 : i64, scratch_operands = 0 : i64, tpu.core_type = #tpu.core_type<tc>, window_params = [{transform_indices = @transform_0, window_bounds = array<i64: 1, 1024>}, {pipeline_mode = #tpu.pipeline_mode<synchronous>, transform_indices = @transform_1, window_bounds = array<i64: 32, 1>}, {pipeline_mode = #tpu.pipeline_mode<synchronous>, transform_indices = @transform_2, window_bounds = array<i64: 32, 1>}, {pipeline_mode = #tpu.pipeline_mode<synchronous>, transform_indices = @transform_3, window_bounds = array<i64: 64, 32>}, {pipeline_mode = #tpu.pipeline_mode<synchronous>, transform_indices = @transform_4, window_bounds = array<i64: 64, 1>}, {pipeline_mode = #tpu.pipeline_mode<synchronous>, transform_indices = @transform_5, window_bounds = array<i64: 1, 64>}, {pipeline_mode = #tpu.pipeline_mode<synchronous>, transform_indices = @transform_6, window_bounds = array<i64: 1, 1>}, {transform_indices = @transform_7, window_bounds = array<i64: 1, 1024>}]} {
    %c0 = arith.constant 0 : index
    %c0_0 = arith.constant 0 : index
    %0 = vector.load %arg1[%c0, %c0_0] : memref<1x1024xf32, #tpu.memory_space<vmem>>, vector<1x1024xf32>
    %c0_1 = arith.constant 0 : index
    %c0_2 = arith.constant 0 : index
    %1 = vector.load %arg2[%c0_1, %c0_2] : memref<32x1xf32, #tpu.memory_space<vmem>>, vector<32x1xf32>
    %c0_3 = arith.constant 0 : index
    %c0_4 = arith.constant 0 : index
    %2 = vector.load %arg3[%c0_3, %c0_4] : memref<32x1xf32, #tpu.memory_space<vmem>>, vector<32x1xf32>
    %3 = vector.broadcast %1 : vector<32x1xf32> to vector<32x1024xf32>
    %4 = vector.broadcast %0 : vector<1x1024xf32> to vector<32x1024xf32>
    %5 = arith.mulf %3, %4 : vector<32x1024xf32>
    %6 = vector.broadcast %2 : vector<32x1xf32> to vector<32x1024xf32>
    %7 = arith.addf %5, %6 : vector<32x1024xf32>
    %cst = arith.constant 5.000000e-02 : f32
    %8 = vector.broadcast %cst : f32 to vector<32x1024xf32>
    %9 = arith.mulf %8, %7 : vector<32x1024xf32>
    %10 = arith.maximumf %7, %9 : vector<32x1024xf32>
    %c0_5 = arith.constant 0 : index
    %c0_6 = arith.constant 0 : index
    %11 = vector.load %arg4[%c0_5, %c0_6] : memref<64x32xf32, #tpu.memory_space<vmem>>, vector<64x32xf32>
    %c0_7 = arith.constant 0 : index
    %c0_8 = arith.constant 0 : index
    %12 = vector.load %arg5[%c0_7, %c0_8] : memref<64x1xf32, #tpu.memory_space<vmem>>, vector<64x1xf32>
    %cst_9 = arith.constant dense<0.000000e+00> : vector<64x1024xf32>
    %13 = tpu.matmul %11, %10, %cst_9 {dimension_numbers = #tpu.dot_dimension_numbers<[1], [0], [0], [1], [0, 0, 1, 1], [], []>} : vector<64x32xf32>, vector<32x1024xf32>, vector<64x1024xf32> -> vector<64x1024xf32>
    %14 = vector.broadcast %12 : vector<64x1xf32> to vector<64x1024xf32>
    %15 = arith.addf %13, %14 : vector<64x1024xf32>
    %cst_10 = arith.constant 5.000000e-02 : f32
    %16 = vector.broadcast %cst_10 : f32 to vector<64x1024xf32>
    %17 = arith.mulf %16, %15 : vector<64x1024xf32>
    %18 = arith.maximumf %15, %17 : vector<64x1024xf32>
    %c0_11 = arith.constant 0 : index
    %c0_12 = arith.constant 0 : index
    %19 = vector.load %arg6[%c0_11, %c0_12] : memref<1x64xf32, #tpu.memory_space<vmem>>, vector<1x64xf32>
    %c0_13 = arith.constant 0 : index
    %c0_14 = arith.constant 0 : index
    %20 = vector.load %arg7[%c0_13, %c0_14] : memref<1x1xf32, #tpu.memory_space<vmem>>, vector<1x1xf32>
    %21 = vector.shape_cast %19 : vector<1x64xf32> to vector<64x1xf32>
    %22 = vector.broadcast %21 : vector<64x1xf32> to vector<64x1024xf32>
    %23 = arith.mulf %22, %18 : vector<64x1024xf32>
    %cst_15 = arith.constant dense<0.000000e+00> : vector<1024xf32>
    %24 = vector.multi_reduction <add>, %23, %cst_15 [0] : vector<64x1024xf32> to vector<1024xf32>
    %25 = vector.shape_cast %24 : vector<1024xf32> to vector<1x1024xf32>
    %26 = vector.broadcast %20 : vector<1x1xf32> to vector<1x1024xf32>
    %27 = arith.addf %25, %26 : vector<1x1024xf32>
    %c0_16 = arith.constant 0 : index
    %c0_17 = arith.constant 0 : index
    %28 = vector.load %arg8[%c0_16, %c0_17] : memref<1x1024xf32, #tpu.memory_space<vmem>>, vector<1x1024xf32>
    tpu.vector_store %arg8[%c0_16, %c0_17], %27 {strides = array<i32>} : memref<1x1024xf32, #tpu.memory_space<vmem>>, vector<1x1024xf32>,
    return
  }
  func.func @transform_0(%arg0: i32) -> (i32, i32) {
    %c0_i32 = arith.constant 0 : i32
    %c0_i32_0 = arith.constant 0 : i32
    return %c0_i32, %arg0 : i32, i32
  }
  func.func @transform_1(%arg0: i32) -> (i32, i32) {
    %c0_i32 = arith.constant 0 : i32
    %c0_i32_0 = arith.constant 0 : i32
    %c0_i32_1 = arith.constant 0 : i32
    return %c0_i32, %c0_i32_0 : i32, i32
  }
  func.func @transform_2(%arg0: i32) -> (i32, i32) {
    %c0_i32 = arith.constant 0 : i32
    %c0_i32_0 = arith.constant 0 : i32
    %c0_i32_1 = arith.constant 0 : i32
    return %c0_i32, %c0_i32_0 : i32, i32
  }
  func.func @transform_3(%arg0: i32) -> (i32, i32) {
    %c0_i32 = arith.constant 0 : i32
    %c0_i32_0 = arith.constant 0 : i32
    %c0_i32_1 = arith.constant 0 : i32
    return %c0_i32, %c0_i32_0 : i32, i32
  }
  func.func @transform_4(%arg0: i32) -> (i32, i32) {
    %c0_i32 = arith.constant 0 : i32
    %c0_i32_0 = arith.constant 0 : i32
    %c0_i32_1 = arith.constant 0 : i32
    return %c0_i32, %c0_i32_0 : i32, i32
  }
  func.func @transform_5(%arg0: i32) -> (i32, i32) {
    %c0_i32 = arith.constant 0 : i32
    %c0_i32_0 = arith.constant 0 : i32
    %c0_i32_1 = arith.constant 0 : i32
    return %c0_i32, %c0_i32_0 : i32, i32
  }
  func.func @transform_6(%arg0: i32) -> (i32, i32) {
    %c0_i32 = arith.constant 0 : i32
    %c0_i32_0 = arith.constant 0 : i32
    %c0_i32_1 = arith.constant 0 : i32
    return %c0_i32, %c0_i32_0 : i32, i32
  }
  func.func @transform_7(%arg0: i32) -> (i32, i32) {
    %c0_i32 = arith.constant 0 : i32
    %c0_i32_0 = arith.constant 0 : i32
    return %c0_i32, %arg0 : i32, i32
  }
}

</mosaic_0001>

<llo_original>
// kernel: feature_transformer.1
$region0: #{feature_transformer.1}
  #allocation0 [shape = 'u32[]', space=smem, size = 0x4, offset = 0x4, fixed_abs, tag = 'smem constant byte address 0x4 - core index']
  #allocation1 [shape = 'u32[72,128]{1,0:T(1,128)}', space=vmem, size = 0x9000, scoped, tag = 'internal scratch']
  #allocation2 [shape = 'f32[1,1]{1,0:T(1,128)S(1)}', space=vmem, size = 0x200, scoped, tag = 'scoped memory for feature_transformer.1']
  %s0 = inlined_call_operand.vmem [shape: f32[1,2048], index: 0, kind: input, shape index: {}]
  %s1 = inlined_call_operand.vmem [shape: f32[32,1], index: 1, kind: input, shape index: {}]
  %s2 = inlined_call_operand.vmem [shape: f32[32,1], index: 2, kind: input, shape index: {}]
  %s3 = inlined_call_operand.vmem [shape: f32[64,32], index: 3, kind: input, shape index: {}]
  %s4 = inlined_call_operand.vmem [shape: f32[64,1], index: 4, kind: input, shape index: {}]
  %s5 = inlined_call_operand.vmem [shape: f32[1,64], index: 5, kind: input, shape index: {}]
  %s6 = inlined_call_operand.<no memory space> [shape: f32[1,1], index: 6, kind: input, shape index: {}]
  %s7 = inlined_call_operand.hbm [shape: f32[1,2048], index: 7, kind: output, shape index: {}]
  %s8 = sld [smem:[#allocation0]]
  $region61: #{feature_transformer.1} parent=0
    _
  %s10 = ssub.s32 1, %s8
  %s11 = scalar_select 0, %s10, %s8
  %v12 = vstv %s6
  %13 = vst [vmem:[#allocation2] sm:$0x1] %v12
  $region1: #{feature_transformer.1} parent=0
    #allocation3 [shape = 'u8[8192]{0}', space=vmem, size = 0x2000, scoped, tag = 'output window, operand 0']
    #allocation4 [shape = 's32[2]{0}', space=sflag, size = 0x8, scoped, tag = 'scoped memory for feature_transformer.1']
    %14 = vsyncpa [#allocation4], 0
    %s15 = scalar_lea.sflag [#allocation4], 1
    %16 = vsyncpa %s15, 0
    loop: start=0, step=1, limit=4
    $region2: #{feature_transformer.1} parent=1 // loop_pre_header
      _
    $region3: #{feature_transformer.1} parent=1 // loop_header
      %s18 = sphi 0, %s22
      %p19 = scmp.ge.s32.totalorder %s18, 4
      %s28 = sphi 0, %s30
      %s31 = sphi 0, %s28
      %s32 = sphi 0, %s31
      %s48 = sphi 0, %s32
      %s52 = sphi 0, %s52
      %s54 = sphi 0, %s52
      %s55 = sphi 0, %s54
      %s69 = sphi 0, %s55
      %s73 = sphi 0, %s73
      %s75 = sphi 0, %s73
      %s76 = sphi 0, %s75
      %s90 = sphi 0, %s76
      %s94 = sphi 0, %s94
      %s96 = sphi 0, %s94
      %s97 = sphi 0, %s96
      %s111 = sphi 0, %s97
      %s115 = sphi 0, %s115
      %s117 = sphi 0, %s115
      %s118 = sphi 0, %s117
      %s132 = sphi 0, %s118
      %s136 = sphi 0, %s136
      %s138 = sphi 0, %s136
      %s139 = sphi 0, %s138
      %s153 = sphi 0, %s139
      %s157 = sphi 0, %s157
      %s159 = sphi 0, %s157
      %s160 = sphi 0, %s159
      %s174 = sphi 0, %s160
      %s180 = sphi 0, %s182
      %s183 = sphi 0, %s180
      %s184 = sphi 0, %s183
      %s200 = sphi 0, %s184
    $region4: #{feature_transformer.1} parent=1 // loop_header_branch
      %21 = sbr.rel (%p19) target = $region8
    $region5: #{feature_transformer.1} parent=1 // loop_body
      %s23 = ssub.s32 %s18, 1
      %s24 = ssub.s32 %s18, 2
      %s25 = sadd.s32 %s18, 1
      %s26 = ssub.s32 %s18, %s25
      %p27 = scmp.eq.s32.totalorder %s26, 0
      %s29 = sadd.s32 %s28, 1
      %s30 = scalar_select %p27, %s28, %s29
      %p33 = pneg %p27
      %p34 = scmp.eq.s32.totalorder %s18, 1
      %p35 = por %p33, %p34
      %p36 = scmp.ne.s32.totalorder %s28, %s31
      %p37 = scmp.eq.s32.totalorder %s18, 0
      %p38 = por %p36, %p37
      %p39 = scmp.ne.s32.totalorder %s28, %s31
      %p40 = scmp.eq.s32.totalorder %s23, 1
      %p41 = por %p39, %p40
      %p42 = scmp.ne.s32.totalorder %s31, %s32
      %p43 = scmp.eq.s32.totalorder %s23, 0
      %p44 = por %p42, %p43
      %p45 = scmp.ne.s32.totalorder %s31, %s32
      %p46 = scmp.eq.s32.totalorder %s24, 1
      %p47 = por %p45, %p46
      %p49 = scmp.ne.s32.totalorder %s32, %s48
      %p50 = scmp.eq.s32.totalorder %s24, 0
      %p51 = por %p49, %p50
      %s53 = sadd.s32 %s52, 1
      %p56 = scmp.eq.s32.totalorder %s18, 1
      %p57 = scmp.ne.s32.totalorder %s52, %s54
      %p58 = scmp.eq.s32.totalorder %s18, 0
      %p59 = por %p57, %p58
      %p60 = scmp.ne.s32.totalorder %s52, %s54
      %p61 = scmp.eq.s32.totalorder %s23, 1
      %p62 = por %p60, %p61
      %p63 = scmp.ne.s32.totalorder %s54, %s55
      %p64 = scmp.eq.s32.totalorder %s23, 0
      %p65 = por %p63, %p64
      %p66 = scmp.ne.s32.totalorder %s54, %s55
      %p67 = scmp.eq.s32.totalorder %s24, 1
      %p68 = por %p66, %p67
      %p70 = scmp.ne.s32.totalorder %s55, %s69
      %p71 = scmp.eq.s32.totalorder %s24, 0
      %p72 = por %p70, %p71
      %s74 = sadd.s32 %s73, 1
      %p77 = scmp.eq.s32.totalorder %s18, 1
      %p78 = scmp.ne.s32.totalorder %s73, %s75
      %p79 = scmp.eq.s32.totalorder %s18, 0
      %p80 = por %p78, %p79
      %p81 = scmp.ne.s32.totalorder %s73, %s75
      %p82 = scmp.eq.s32.totalorder %s23, 1
      %p83 = por %p81, %p82
      %p84 = scmp.ne.s32.totalorder %s75, %s76
      %p85 = scmp.eq.s32.totalorder %s23, 0
      %p86 = por %p84, %p85
      %p87 = scmp.ne.s32.totalorder %s75, %s76
      %p88 = scmp.eq.s32.totalorder %s24, 1
      %p89 = por %p87, %p88
      %p91 = scmp.ne.s32.totalorder %s76, %s90
      %p92 = scmp.eq.s32.totalorder %s24, 0
      %p93 = por %p91, %p92
      %s95 = sadd.s32 %s94, 1
      %p98 = scmp.eq.s32.totalorder %s18, 1
      %p99 = scmp.ne.s32.totalorder %s94, %s96
      %p100 = scmp.eq.s32.totalorder %s18, 0
      %p101 = por %p99, %p100
      %p102 = scmp.ne.s32.totalorder %s94, %s96
      %p103 = scmp.eq.s32.totalorder %s23, 1
      %p104 = por %p102, %p103
      %p105 = scmp.ne.s32.totalorder %s96, %s97
      %p106 = scmp.eq.s32.totalorder %s23, 0
      %p107 = por %p105, %p106
      %p108 = scmp.ne.s32.totalorder %s96, %s97
      %p109 = scmp.eq.s32.totalorder %s24, 1
      %p110 = por %p108, %p109
      %p112 = scmp.ne.s32.totalorder %s97, %s111
      %p113 = scmp.eq.s32.totalorder %s24, 0
      %p114 = por %p112, %p113
      %s116 = sadd.s32 %s115, 1
      %p119 = scmp.eq.s32.totalorder %s18, 1
      %p120 = scmp.ne.s32.totalorder %s115, %s117
      %p121 = scmp.eq.s32.totalorder %s18, 0
      %p122 = por %p120, %p121
      %p123 = scmp.ne.s32.totalorder %s115, %s117
      %p124 = scmp.eq.s32.totalorder %s23, 1
      %p125 = por %p123, %p124
      %p126 = scmp.ne.s32.totalorder %s117, %s118
      %p127 = scmp.eq.s32.totalorder %s23, 0
      %p128 = por %p126, %p127
      %p129 = scmp.ne.s32.totalorder %s117, %s118
      %p130 = scmp.eq.s32.totalorder %s24, 1
      %p131 = por %p129, %p130
      %p133 = scmp.ne.s32.totalorder %s118, %s132
      %p134 = scmp.eq.s32.totalorder %s24, 0
      %p135 = por %p133, %p134
      %s137 = sadd.s32 %s136, 1
      %p140 = scmp.eq.s32.totalorder %s18, 1
      %p141 = scmp.ne.s32.totalorder %s136, %s138
      %p142 = scmp.eq.s32.totalorder %s18, 0
      %p143 = por %p141, %p142
      %p144 = scmp.ne.s32.totalorder %s136, %s138
      %p145 = scmp.eq.s32.totalorder %s23, 1
      %p146 = por %p144, %p145
      %p147 = scmp.ne.s32.totalorder %s138, %s139
      %p148 = scmp.eq.s32.totalorder %s23, 0
      %p149 = por %p147, %p148
      %p150 = scmp.ne.s32.totalorder %s138, %s139
      %p151 = scmp.eq.s32.totalorder %s24, 1
      %p152 = por %p150, %p151
      %p154 = scmp.ne.s32.totalorder %s139, %s153
      %p155 = scmp.eq.s32.totalorder %s24, 0
      %p156 = por %p154, %p155
      %s158 = sadd.s32 %s157, 1
      %p161 = scmp.eq.s32.totalorder %s18, 1
      %p162 = scmp.ne.s32.totalorder %s157, %s159
      %p163 = scmp.eq.s32.totalorder %s18, 0
      %p164 = por %p162, %p163
      %p165 = scmp.ne.s32.totalorder %s157, %s159
      %p166 = scmp.eq.s32.totalorder %s23, 1
      %p167 = por %p165, %p166
      %p168 = scmp.ne.s32.totalorder %s159, %s160
      %p169 = scmp.eq.s32.totalorder %s23, 0
      %p170 = por %p168, %p169
      %p171 = scmp.ne.s32.totalorder %s159, %s160
      %p172 = scmp.eq.s32.totalorder %s24, 1
      %p173 = por %p171, %p172
      %p175 = scmp.ne.s32.totalorder %s160, %s174
      %p176 = scmp.eq.s32.totalorder %s24, 0
      %p177 = por %p175, %p176
      %s178 = ssub.s32 %s18, %s25
      %p179 = scmp.eq.s32.totalorder %s178, 0
      %s181 = sadd.s32 %s180, 1
      %s182 = scalar_select %p179, %s180, %s181
      %p185 = pneg %p179
      %p186 = scmp.eq.s32.totalorder %s18, 1
      %p187 = por %p185, %p186
      %p188 = scmp.ne.s32.totalorder %s180, %s183
      %p189 = scmp.eq.s32.totalorder %s18, 0
      %p190 = por %p188, %p189
      %p191 = scmp.ne.s32.totalorder %s180, %s183
      %p192 = scmp.eq.s32.totalorder %s23, 1
      %p193 = por %p191, %p192
      %p194 = scmp.ne.s32.totalorder %s183, %s184
      %p195 = scmp.eq.s32.totalorder %s23, 0
      %p196 = por %p194, %p195
      %p197 = scmp.ne.s32.totalorder %s183, %s184
      %p198 = scmp.eq.s32.totalorder %s24, 1
      %p199 = por %p197, %p198
      %p201 = scmp.ne.s32.totalorder %s184, %s200
      %p202 = scmp.eq.s32.totalorder %s24, 0
      %p203 = por %p201, %p202
      %p204 = scmp.le.s32.totalorder 1, %s18
      %p205 = scmp.lt.s32.totalorder %s18, 3
      %p206 = pnand %p204, %p205
      %p207 = pneg %p206
      // Predicated region
      $region9: #{feature_transformer.1} parent=5 // pred_check
        _
      $region10: #{feature_transformer.1} parent=5 // pred_check_branch
        %209 = sbr.rel (%p206) target = $region12
      $region11: #{feature_transformer.1} parent=5 // pred_region
        %s210 = ssub.s32 %s18, 1
        // Predicated region
        $region13: #{feature_transformer.1} parent=11 // pred_check
          %p211 = pneg %p65
        $region14: #{feature_transformer.1} parent=11 // pred_check_branch
          %213 = sbr.rel (%p211) target = $region16
        $region15: #{feature_transformer.1} parent=11 // pred_region
          _
        $region16: #{feature_transformer.1} parent=11 // pred_fallthru
          _
        // Predicated region
        $region17: #{feature_transformer.1} parent=11 // pred_check
          %p214 = pneg %p86
        $region18: #{feature_transformer.1} parent=11 // pred_check_branch
          %216 = sbr.rel (%p214) target = $region20
        $region19: #{feature_transformer.1} parent=11 // pred_region
          _
        $region20: #{feature_transformer.1} parent=11 // pred_fallthru
          _
        // Predicated region
        $region21: #{feature_transformer.1} parent=11 // pred_check
          %p217 = pneg %p107
        $region22: #{feature_transformer.1} parent=11 // pred_check_branch
          %219 = sbr.rel (%p217) target = $region24
        $region23: #{feature_transformer.1} parent=11 // pred_region
          _
        $region24: #{feature_transformer.1} parent=11 // pred_fallthru
          _
        // Predicated region
        $region25: #{feature_transformer.1} parent=11 // pred_check
          %p220 = pneg %p128
        $region26: #{feature_transformer.1} parent=11 // pred_check_branch
          %222 = sbr.rel (%p220) target = $region28
        $region27: #{feature_transformer.1} parent=11 // pred_region
          _
        $region28: #{feature_transformer.1} parent=11 // pred_fallthru
          _
        // Predicated region
        $region29: #{feature_transformer.1} parent=11 // pred_check
          %p223 = pneg %p149
        $region30: #{feature_transformer.1} parent=11 // pred_check_branch
          %225 = sbr.rel (%p223) target = $region32
        $region31: #{feature_transformer.1} parent=11 // pred_region
          _
        $region32: #{feature_transformer.1} parent=11 // pred_fallthru
          _
        // Predicated region
        $region33: #{feature_transformer.1} parent=11 // pred_check
          %p226 = pneg %p170
        $region34: #{feature_transformer.1} parent=11 // pred_check_branch
          %228 = sbr.rel (%p226) target = $region36
        $region35: #{feature_transformer.1} parent=11 // pred_region
          _
        $region36: #{feature_transformer.1} parent=11 // pred_fallthru
          _
      $region12: #{feature_transformer.1} parent=5 // pred_fallthru
        _
      %p229 = scmp.lt.s32.totalorder %s18, 2
      // Predicated region
      $region37: #{feature_transformer.1} parent=5 // pred_check
        %p230 = pneg %p229
      $region38: #{feature_transformer.1} parent=5 // pred_check_branch
        %232 = sbr.rel (%p230) target = $region40
      $region39: #{feature_transformer.1} parent=5 // pred_region
        // Predicated region
        $region41: #{feature_transformer.1} parent=39 // pred_check
          %p233 = pneg %p38
        $region42: #{feature_transformer.1} parent=39 // pred_check_branch
          %235 = sbr.rel (%p233) target = $region44
        $region43: #{feature_transformer.1} parent=39 // pred_region
          %s236 = smul.u32 8, %s18
          %p237 = scmp.lt.s32.totalorder %s236, 15
          %s238 = scalar_select %p237, %s236, 15
          %s239 = scalar_lea.vmem %s0, %s238
          %s240 = smul.u32 8, %s18
        $region44: #{feature_transformer.1} parent=39 // pred_fallthru
          _
      $region40: #{feature_transformer.1} parent=5 // pred_fallthru
        _
      %p241 = scmp.le.s32.totalorder 1, %s18
      %p242 = scmp.lt.s32.totalorder %s18, 3
      %p243 = pnand %p241, %p242
      %p244 = pneg %p243
      // Predicated region
      $region45: #{feature_transformer.1} parent=5 // pred_check
        _
      $region46: #{feature_transformer.1} parent=5 // pred_check_branch
        %246 = sbr.rel (%p243) target = $region48
      $region47: #{feature_transformer.1} parent=5 // pred_region
        %s247 = ssub.s32 %s18, 1
        %s248 = smul.u32 8, %s23
        %p249 = scmp.lt.s32.totalorder %s248, 15
        %s250 = scalar_select %p249, %s248, 15
        %s251 = scalar_lea.vmem %s0, %s250
        %p252 = pneg %p44
        %p253 = pneg %p41
        %p254 = pneg %p65
        %p255 = pneg %p62
        %p256 = pneg %p86
        %p257 = pneg %p83
        %p258 = pneg %p107
        %p259 = pneg %p104
        %p260 = pneg %p128
        %p261 = pneg %p125
        %p262 = pneg %p149
        %p263 = pneg %p146
        %p264 = pneg %p170
        %p265 = pneg %p167
        %p266 = pneg %p196
        %p267 = pneg %p193
        %s268 = sand.u32 %s183, 1
        %s269 = scalar_lea.sflag [#allocation4], %s268
        %s270 = sand.u32 %s183, 1
        %s271 = smul.addr %s270, 8
        %s272 = scalar_lea.vmem [#allocation3], %s271
        %s273 = smul.u32 8, %s23
        %p274 = scmp.lt.s32.totalorder %s273, 15
        %s275 = scalar_select %p274, %s273, 15
        %s276 = scalar_lea.vmem %s0, %s275
        %s277 = smul.u32 8, %s23
        %s278 = smul.u32 8, %s23
        %v279 = vld [vmem:[%s276] sm:$0xff]
        %v280 = vld [vmem:[%s1] sm:$0xff]
        %v281 = vld [vmem:[%s1 + $0x8] sm:$0xff]
        %v282 = vld [vmem:[%s1 + $0x10] sm:$0xff]
        %v283 = vld [vmem:[%s1 + $0x18] sm:$0xff]
        %v284 = vld [vmem:[%s2] sm:$0xff]
        %v285 = vld [vmem:[%s2 + $0x8] sm:$0xff]
        %v286 = vld [vmem:[%s2 + $0x10] sm:$0xff]
        %v287 = vld [vmem:[%s2 + $0x18] sm:$0xff]
        %289 = vset.pattern.permute.xlu0 0
        %290 = vperm.xlu0 %289, %v280
        %v291 = vpop.permute.xlu0 %290
        %294 = vset.pattern.permute.xlu0 0
        %295 = vperm.xlu0 %294, %v281
        %v296 = vpop.permute.xlu0 %295
        %299 = vset.pattern.permute.xlu0 0
        %300 = vperm.xlu0 %299, %v282
        %v301 = vpop.permute.xlu0 %300
        %304 = vset.pattern.permute.xlu0 0
        %305 = vperm.xlu0 %304, %v283
        %v306 = vpop.permute.xlu0 %305
        %v309 = vperm.slane %v279, 0
        %v310 = vperm.slane %v279, 1
        %v311 = vperm.slane %v279, 2
        %v312 = vperm.slane %v279, 3
        %v313 = vperm.slane %v279, 4
        %v314 = vperm.slane %v279, 5
        %v315 = vperm.slane %v279, 6
        %v316 = vperm.slane %v279, 7
        %v325 = vmul.f32 %v291, %v309
        %v326 = vmul.f32 %v291, %v310
        %v327 = vmul.f32 %v291, %v311
        %v328 = vmul.f32 %v291, %v312
        %v329 = vmul.f32 %v291, %v313
        %v330 = vmul.f32 %v291, %v314
        %v331 = vmul.f32 %v291, %v315
        %v332 = vmul.f32 %v291, %v316
        %v333 = vmul.f32 %v296, %v309
        %v334 = vmul.f32 %v296, %v310
        %v335 = vmul.f32 %v296, %v311
        %v336 = vmul.f32 %v296, %v312
        %v337 = vmul.f32 %v296, %v313
        %v338 = vmul.f32 %v296, %v314
        %v339 = vmul.f32 %v296, %v315
        %v340 = vmul.f32 %v296, %v316
        %v341 = vmul.f32 %v301, %v309
        %v342 = vmul.f32 %v301, %v310
        %v343 = vmul.f32 %v301, %v311
        %v344 = vmul.f32 %v301, %v312
        %v345 = vmul.f32 %v301, %v313
        %v346 = vmul.f32 %v301, %v314
        %v347 = vmul.f32 %v301, %v315
        %v348 = vmul.f32 %v301, %v316
        %v349 = vmul.f32 %v306, %v309
        %v350 = vmul.f32 %v306, %v310
        %v351 = vmul.f32 %v306, %v311
        %v352 = vmul.f32 %v306, %v312
        %v353 = vmul.f32 %v306, %v313
        %v354 = vmul.f32 %v306, %v314
        %v355 = vmul.f32 %v306, %v315
        %v356 = vmul.f32 %v306, %v316
        %358 = vset.pattern.permute.xlu0 0
        %359 = vperm.xlu0 %358, %v284
        %v360 = vpop.permute.xlu0 %359
        %363 = vset.pattern.permute.xlu0 0
        %364 = vperm.xlu0 %363, %v285
        %v365 = vpop.permute.xlu0 %364
        %368 = vset.pattern.permute.xlu0 0
        %369 = vperm.xlu0 %368, %v286
        %v370 = vpop.permute.xlu0 %369
        %373 = vset.pattern.permute.xlu0 0
        %374 = vperm.xlu0 %373, %v287
        %v375 = vpop.permute.xlu0 %374
        %v377 = vadd.f32 %v325, %v360
        %v378 = vadd.f32 %v326, %v360
        %v379 = vadd.f32 %v327, %v360
        %v380 = vadd.f32 %v328, %v360
        %v381 = vadd.f32 %v329, %v360
        %v382 = vadd.f32 %v330, %v360
        %v383 = vadd.f32 %v331, %v360
        %v384 = vadd.f32 %v332, %v360
        %v385 = vadd.f32 %v333, %v365
        %v386 = vadd.f32 %v334, %v365
        %v387 = vadd.f32 %v335, %v365
        %v388 = vadd.f32 %v336, %v365
        %v389 = vadd.f32 %v337, %v365
        %v390 = vadd.f32 %v338, %v365
        %v391 = vadd.f32 %v339, %v365
        %v392 = vadd.f32 %v340, %v365
        %v393 = vadd.f32 %v341, %v370
        %v394 = vadd.f32 %v342, %v370
        %v395 = vadd.f32 %v343, %v370
        %v396 = vadd.f32 %v344, %v370
        %v397 = vadd.f32 %v345, %v370
        %v398 = vadd.f32 %v346, %v370
        %v399 = vadd.f32 %v347, %v370
        %v400 = vadd.f32 %v348, %v370
        %v401 = vadd.f32 %v349, %v375
        %v402 = vadd.f32 %v350, %v375
        %v403 = vadd.f32 %v351, %v375
        %v404 = vadd.f32 %v352, %v375
        %v405 = vadd.f32 %v353, %v375
        %v406 = vadd.f32 %v354, %v375
        %v407 = vadd.f32 %v355, %v375
        %v408 = vadd.f32 %v356, %v375
        %v409 = vmul.f32 %v377, 0.05
        %v410 = vmul.f32 %v378, 0.05
        %v411 = vmul.f32 %v379, 0.05
        %v412 = vmul.f32 %v380, 0.05
        %v413 = vmul.f32 %v381, 0.05
        %v414 = vmul.f32 %v382, 0.05
        %v415 = vmul.f32 %v383, 0.05
        %v416 = vmul.f32 %v384, 0.05
        %v417 = vmul.f32 %v385, 0.05
        %v418 = vmul.f32 %v386, 0.05
        %v419 = vmul.f32 %v387, 0.05
        %v420 = vmul.f32 %v388, 0.05
        %v421 = vmul.f32 %v389, 0.05
        %v422 = vmul.f32 %v390, 0.05
        %v423 = vmul.f32 %v391, 0.05
        %v424 = vmul.f32 %v392, 0.05
        %v425 = vmul.f32 %v393, 0.05
        %v426 = vmul.f32 %v394, 0.05
        %v427 = vmul.f32 %v395, 0.05
        %v428 = vmul.f32 %v396, 0.05
        %v429 = vmul.f32 %v397, 0.05
        %v430 = vmul.f32 %v398, 0.05
        %v431 = vmul.f32 %v399, 0.05
        %v432 = vmul.f32 %v400, 0.05
        %v433 = vmul.f32 %v401, 0.05
        %v434 = vmul.f32 %v402, 0.05
        %v435 = vmul.f32 %v403, 0.05
        %v436 = vmul.f32 %v404, 0.05
        %v437 = vmul.f32 %v405, 0.05
        %v438 = vmul.f32 %v406, 0.05
        %v439 = vmul.f32 %v407, 0.05
        %v440 = vmul.f32 %v408, 0.05
        %v441 = vmax.f32 %v377, %v409
        %v442 = vmax.f32 %v378, %v410
        %v443 = vmax.f32 %v379, %v411
        %v444 = vmax.f32 %v380, %v412
        %v445 = vmax.f32 %v381, %v413
        %v446 = vmax.f32 %v382, %v414
        %v447 = vmax.f32 %v383, %v415
        %v448 = vmax.f32 %v384, %v416
        %v449 = vmax.f32 %v385, %v417
        %v450 = vmax.f32 %v386, %v418
        %v451 = vmax.f32 %v387, %v419
        %v452 = vmax.f32 %v388, %v420
        %v453 = vmax.f32 %v389, %v421
        %v454 = vmax.f32 %v390, %v422
        %v455 = vmax.f32 %v391, %v423
        %v456 = vmax.f32 %v392, %v424
        %v457 = vmax.f32 %v393, %v425
        %v458 = vmax.f32 %v394, %v426
        %v459 = vmax.f32 %v395, %v427
        %v460 = vmax.f32 %v396, %v428
        %v461 = vmax.f32 %v397, %v429
        %v462 = vmax.f32 %v398, %v430
        %v463 = vmax.f32 %v399, %v431
        %v464 = vmax.f32 %v400, %v432
        %v465 = vmax.f32 %v401, %v433
        %v466 = vmax.f32 %v402, %v434
        %v467 = vmax.f32 %v403, %v435
        %v468 = vmax.f32 %v404, %v436
        %v469 = vmax.f32 %v405, %v437
        %v470 = vmax.f32 %v406, %v438
        %v471 = vmax.f32 %v407, %v439
        %v472 = vmax.f32 %v408, %v440
        %v473 = vld [vmem:[%s3] sm:$0xff]
        %v474 = vld [vmem:[%s3 + $0x8] sm:$0xff]
        %v475 = vld [vmem:[%s3 + $0x10] sm:$0xff]
        %v476 = vld [vmem:[%s3 + $0x18] sm:$0xff]
        %v477 = vld [vmem:[%s3 + $0x20] sm:$0xff]
        %v478 = vld [vmem:[%s3 + $0x28] sm:$0xff]
        %v479 = vld [vmem:[%s3 + $0x30] sm:$0xff]
        %v480 = vld [vmem:[%s3 + $0x38] sm:$0xff]
        %v481 = vld [vmem:[%s4] sm:$0xff]
        %v482 = vld [vmem:[%s4 + $0x8] sm:$0xff]
        %v483 = vld [vmem:[%s4 + $0x10] sm:$0xff]
        %v484 = vld [vmem:[%s4 + $0x18] sm:$0xff]
        %v485 = vld [vmem:[%s4 + $0x20] sm:$0xff]
        %v486 = vld [vmem:[%s4 + $0x28] sm:$0xff]
        %v487 = vld [vmem:[%s4 + $0x30] sm:$0xff]
        %v488 = vld [vmem:[%s4 + $0x38] sm:$0xff]
        %490 = vset.pattern.permute.xlu0 0
        %491 = vperm.xlu0 %490, %v481
        %v492 = vpop.permute.xlu0 %491
        %495 = vset.pattern.permute.xlu0 0
        %496 = vperm.xlu0 %495, %v482
        %v497 = vpop.permute.xlu0 %496
        %500 = vset.pattern.permute.xlu0 0
        %501 = vperm.xlu0 %500, %v483
        %v502 = vpop.permute.xlu0 %501
        %505 = vset.pattern.permute.xlu0 0
        %506 = vperm.xlu0 %505, %v484
        %v507 = vpop.permute.xlu0 %506
        %510 = vset.pattern.permute.xlu0 0
        %511 = vperm.xlu0 %510, %v485
        %v512 = vpop.permute.xlu0 %511
        %515 = vset.pattern.permute.xlu0 0
        %516 = vperm.xlu0 %515, %v486
        %v517 = vpop.permute.xlu0 %516
        %520 = vset.pattern.permute.xlu0 0
        %521 = vperm.xlu0 %520, %v487
        %v522 = vpop.permute.xlu0 %521
        %525 = vset.pattern.permute.xlu0 0
        %526 = vperm.xlu0 %525, %v488
        %v527 = vpop.permute.xlu0 %526
        %vm529 = vcmask 261120
        %v531 = vsel %vm529, %v473, 0
        %v534 = vsel %vm529, %v474, 0
        %v537 = vsel %vm529, %v475, 0
        %v540 = vsel %vm529, %v476, 0
        %v543 = vsel %vm529, %v477, 0
        %v546 = vsel %vm529, %v478, 0
        %v549 = vsel %vm529, %v479, 0
        %v552 = vsel %vm529, %v480, 0
        %554 = vmatpush.msra.mxu0 0.0
        %555 = vmatpush.msra.mxu0 0.0
        %556 = vmatpush.msra.mxu0 0.0
        %557 = vmatpush.msra.mxu0 0.0
        %558 = vmatpush.msra.mxu0 0.0
        %559 = vmatpush.msra.mxu0 0.0
        %560 = vmatpush.msra.mxu0 0.0
        %561 = vmatpush.msra.mxu0 0.0
        %562 = vmatpush.msra.mxu0 0.0
        %563 = vmatpush.msra.mxu0 0.0
        %564 = vmatpush.msra.mxu0 0.0
        %565 = vmatpush.msra.mxu0 0.0
        %566 = vmatpush.msra.mxu0 %v465
        %567 = vmatpush.msra.mxu0 %v457
        %568 = vmatpush.msra.mxu0 %v449
        %569 = vmatpush.msra.mxu0 %v441
        %570 = vmatmul.f32.gmra.mxu0 %v531
        %v571 = vpop.f32.mrf.mxu0
        %v572 = vadd.f32 %v492, %v571
        %573 = vmatmul.f32.gmra.mxu0 %v534
        %v574 = vpop.f32.mrf.mxu0
        %v575 = vadd.f32 %v497, %v574
        %576 = vmatmul.f32.gmra.mxu0 %v537
        %v577 = vpop.f32.mrf.mxu0
        %v578 = vadd.f32 %v502, %v577
        %579 = vmatmul.f32.gmra.mxu0 %v540
        %v580 = vpop.f32.mrf.mxu0
        %v581 = vadd.f32 %v507, %v580
        %582 = vmatmul.f32.gmra.mxu0 %v543
        %v583 = vpop.f32.mrf.mxu0
        %v584 = vadd.f32 %v512, %v583
        %585 = vmatmul.f32.gmra.mxu0 %v546
        %v586 = vpop.f32.mrf.mxu0
        %v587 = vadd.f32 %v517, %v586
        %588 = vmatmul.f32.gmra.mxu0 %v549
        %v589 = vpop.f32.mrf.mxu0
        %v590 = vadd.f32 %v522, %v589
        %591 = vmatmul.f32.gmra.mxu0 %v552
        %v592 = vpop.f32.mrf.mxu0
        %v593 = vadd.f32 %v527, %v592
        %594 = vdwg.mxu0
        %595 = vmatpush.msra.mxu0 0.0
        %596 = vmatpush.msra.mxu0 0.0
        %597 = vmatpush.msra.mxu0 0.0
        %598 = vmatpush.msra.mxu0 0.0
        %599 = vmatpush.msra.mxu0 0.0
        %600 = vmatpush.msra.mxu0 0.0
        %601 = vmatpush.msra.mxu0 0.0
        %602 = vmatpush.msra.mxu0 0.0
        %603 = vmatpush.msra.mxu0 0.0
        %604 = vmatpush.msra.mxu0 0.0
        %605 = vmatpush.msra.mxu0 0.0
        %606 = vmatpush.msra.mxu0 0.0
        %607 = vmatpush.msra.mxu0 %v466
        %608 = vmatpush.msra.mxu0 %v458
        %609 = vmatpush.msra.mxu0 %v450
        %610 = vmatpush.msra.mxu0 %v442
        %611 = vmatmul.f32.gmra.mxu0 %v531
        %v612 = vpop.f32.mrf.mxu0
        %v613 = vadd.f32 %v492, %v612
        %614 = vmatmul.f32.gmra.mxu0 %v534
        %v615 = vpop.f32.mrf.mxu0
        %v616 = vadd.f32 %v497, %v615
        %617 = vmatmul.f32.gmra.mxu0 %v537
        %v618 = vpop.f32.mrf.mxu0
        %v619 = vadd.f32 %v502, %v618
        %620 = vmatmul.f32.gmra.mxu0 %v540
        %v621 = vpop.f32.mrf.mxu0
        %v622 = vadd.f32 %v507, %v621
        %623 = vmatmul.f32.gmra.mxu0 %v543
        %v624 = vpop.f32.mrf.mxu0
        %v625 = vadd.f32 %v512, %v624
        %626 = vmatmul.f32.gmra.mxu0 %v546
        %v627 = vpop.f32.mrf.mxu0
        %v628 = vadd.f32 %v517, %v627
        %629 = vmatmul.f32.gmra.mxu0 %v549
        %v630 = vpop.f32.mrf.mxu0
        %v631 = vadd.f32 %v522, %v630
        %632 = vmatmul.f32.gmra.mxu0 %v552
        %v633 = vpop.f32.mrf.mxu0
        %v634 = vadd.f32 %v527, %v633
        %635 = vdwg.mxu0
        %636 = vmatpush.msra.mxu0 0.0
        %637 = vmatpush.msra.mxu0 0.0
        %638 = vmatpush.msra.mxu0 0.0
        %639 = vmatpush.msra.mxu0 0.0
        %640 = vmatpush.msra.mxu0 0.0
        %641 = vmatpush.msra.mxu0 0.0
        %642 = vmatpush.msra.mxu0 0.0
        %643 = vmatpush.msra.mxu0 0.0
        %644 = vmatpush.msra.mxu0 0.0
        %645 = vmatpush.msra.mxu0 0.0
        %646 = vmatpush.msra.mxu0 0.0
        %647 = vmatpush.msra.mxu0 0.0
        %648 = vmatpush.msra.mxu0 %v467
        %649 = vmatpush.msra.mxu0 %v459
        %650 = vmatpush.msra.mxu0 %v451
        %651 = vmatpush.msra.mxu0 %v443
        %652 = vmatmul.f32.gmra.mxu0 %v531
        %v653 = vpop.f32.mrf.mxu0
        %v654 = vadd.f32 %v492, %v653
        %655 = vmatmul.f32.gmra.mxu0 %v534
        %v656 = vpop.f32.mrf.mxu0
        %v657 = vadd.f32 %v497, %v656
        %658 = vmatmul.f32.gmra.mxu0 %v537
        %v659 = vpop.f32.mrf.mxu0
        %v660 = vadd.f32 %v502, %v659
        %661 = vmatmul.f32.gmra.mxu0 %v540
        %v662 = vpop.f32.mrf.mxu0
        %v663 = vadd.f32 %v507, %v662
        %664 = vmatmul.f32.gmra.mxu0 %v543
        %v665 = vpop.f32.mrf.mxu0
        %v666 = vadd.f32 %v512, %v665
        %667 = vmatmul.f32.gmra.mxu0 %v546
        %v668 = vpop.f32.mrf.mxu0
        %v669 = vadd.f32 %v517, %v668
        %670 = vmatmul.f32.gmra.mxu0 %v549
        %v671 = vpop.f32.mrf.mxu0
        %v672 = vadd.f32 %v522, %v671
        %673 = vmatmul.f32.gmra.mxu0 %v552
        %v674 = vpop.f32.mrf.mxu0
        %v675 = vadd.f32 %v527, %v674
        %676 = vdwg.mxu0
        %677 = vmatpush.msra.mxu0 0.0
        %678 = vmatpush.msra.mxu0 0.0
        %679 = vmatpush.msra.mxu0 0.0
        %680 = vmatpush.msra.mxu0 0.0
        %681 = vmatpush.msra.mxu0 0.0
        %682 = vmatpush.msra.mxu0 0.0
        %683 = vmatpush.msra.mxu0 0.0
        %684 = vmatpush.msra.mxu0 0.0
        %685 = vmatpush.msra.mxu0 0.0
        %686 = vmatpush.msra.mxu0 0.0
        %687 = vmatpush.msra.mxu0 0.0
        %688 = vmatpush.msra.mxu0 0.0
        %689 = vmatpush.msra.mxu0 %v468
        %690 = vmatpush.msra.mxu0 %v460
        %691 = vmatpush.msra.mxu0 %v452
        %692 = vmatpush.msra.mxu0 %v444
        %693 = vmatmul.f32.gmra.mxu0 %v531
        %v694 = vpop.f32.mrf.mxu0
        %v695 = vadd.f32 %v492, %v694
        %696 = vmatmul.f32.gmra.mxu0 %v534
        %v697 = vpop.f32.mrf.mxu0
        %v698 = vadd.f32 %v497, %v697
        %699 = vmatmul.f32.gmra.mxu0 %v537
        %v700 = vpop.f32.mrf.mxu0
        %v701 = vadd.f32 %v502, %v700
        %702 = vmatmul.f32.gmra.mxu0 %v540
        %v703 = vpop.f32.mrf.mxu0
        %v704 = vadd.f32 %v507, %v703
        %705 = vmatmul.f32.gmra.mxu0 %v543
        %v706 = vpop.f32.mrf.mxu0
        %v707 = vadd.f32 %v512, %v706
        %708 = vmatmul.f32.gmra.mxu0 %v546
        %v709 = vpop.f32.mrf.mxu0
        %v710 = vadd.f32 %v517, %v709
        %711 = vmatmul.f32.gmra.mxu0 %v549
        %v712 = vpop.f32.mrf.mxu0
        %v713 = vadd.f32 %v522, %v712
        %714 = vmatmul.f32.gmra.mxu0 %v552
        %v715 = vpop.f32.mrf.mxu0
        %v716 = vadd.f32 %v527, %v715
        %717 = vdwg.mxu0
        %718 = vmatpush.msra.mxu0 0.0
        %719 = vmatpush.msra.mxu0 0.0
        %720 = vmatpush.msra.mxu0 0.0
        %721 = vmatpush.msra.mxu0 0.0
        %722 = vmatpush.msra.mxu0 0.0
        %723 = vmatpush.msra.mxu0 0.0
        %724 = vmatpush.msra.mxu0 0.0
        %725 = vmatpush.msra.mxu0 0.0
        %726 = vmatpush.msra.mxu0 0.0
        %727 = vmatpush.msra.mxu0 0.0
        %728 = vmatpush.msra.mxu0 0.0
        %729 = vmatpush.msra.mxu0 0.0
        %730 = vmatpush.msra.mxu0 %v469
        %731 = vmatpush.msra.mxu0 %v461
        %732 = vmatpush.msra.mxu0 %v453
        %733 = vmatpush.msra.mxu0 %v445
        %734 = vmatmul.f32.gmra.mxu0 %v531
        %v735 = vpop.f32.mrf.mxu0
        %v736 = vadd.f32 %v492, %v735
        %737 = vmatmul.f32.gmra.mxu0 %v534
        %v738 = vpop.f32.mrf.mxu0
        %v739 = vadd.f32 %v497, %v738
        %740 = vmatmul.f32.gmra.mxu0 %v537
        %v741 = vpop.f32.mrf.mxu0
        %v742 = vadd.f32 %v502, %v741
        %743 = vmatmul.f32.gmra.mxu0 %v540
        %v744 = vpop.f32.mrf.mxu0
        %v745 = vadd.f32 %v507, %v744
        %746 = vmatmul.f32.gmra.mxu0 %v543
        %v747 = vpop.f32.mrf.mxu0
        %v748 = vadd.f32 %v512, %v747
        %749 = vmatmul.f32.gmra.mxu0 %v546
        %v750 = vpop.f32.mrf.mxu0
        %v751 = vadd.f32 %v517, %v750
        %752 = vmatmul.f32.gmra.mxu0 %v549
        %v753 = vpop.f32.mrf.mxu0
        %v754 = vadd.f32 %v522, %v753
        %755 = vmatmul.f32.gmra.mxu0 %v552
        %v756 = vpop.f32.mrf.mxu0
        %v757 = vadd.f32 %v527, %v756
        %758 = vdwg.mxu0
        %759 = vmatpush.msra.mxu0 0.0
        %760 = vmatpush.msra.mxu0 0.0
        %761 = vmatpush.msra.mxu0 0.0
        %762 = vmatpush.msra.mxu0 0.0
        %763 = vmatpush.msra.mxu0 0.0
        %764 = vmatpush.msra.mxu0 0.0
        %765 = vmatpush.msra.mxu0 0.0
        %766 = vmatpush.msra.mxu0 0.0
        %767 = vmatpush.msra.mxu0 0.0
        %768 = vmatpush.msra.mxu0 0.0
        %769 = vmatpush.msra.mxu0 0.0
        %770 = vmatpush.msra.mxu0 0.0
        %771 = vmatpush.msra.mxu0 %v470
        %772 = vmatpush.msra.mxu0 %v462
        %773 = vmatpush.msra.mxu0 %v454
        %774 = vmatpush.msra.mxu0 %v446
        %775 = vmatmul.f32.gmra.mxu0 %v531
        %v776 = vpop.f32.mrf.mxu0
        %v777 = vadd.f32 %v492, %v776
        %778 = vmatmul.f32.gmra.mxu0 %v534
        %v779 = vpop.f32.mrf.mxu0
        %v780 = vadd.f32 %v497, %v779
        %781 = vmatmul.f32.gmra.mxu0 %v537
        %v782 = vpop.f32.mrf.mxu0
        %v783 = vadd.f32 %v502, %v782
        %784 = vmatmul.f32.gmra.mxu0 %v540
        %v785 = vpop.f32.mrf.mxu0
        %v786 = vadd.f32 %v507, %v785
        %787 = vmatmul.f32.gmra.mxu0 %v543
        %v788 = vpop.f32.mrf.mxu0
        %v789 = vadd.f32 %v512, %v788
        %790 = vmatmul.f32.gmra.mxu0 %v546
        %v791 = vpop.f32.mrf.mxu0
        %v792 = vadd.f32 %v517, %v791
        %793 = vmatmul.f32.gmra.mxu0 %v549
        %v794 = vpop.f32.mrf.mxu0
        %v795 = vadd.f32 %v522, %v794
        %796 = vmatmul.f32.gmra.mxu0 %v552
        %v797 = vpop.f32.mrf.mxu0
        %v798 = vadd.f32 %v527, %v797
        %799 = vdwg.mxu0
        %800 = vmatpush.msra.mxu0 0.0
        %801 = vmatpush.msra.mxu0 0.0
        %802 = vmatpush.msra.mxu0 0.0
        %803 = vmatpush.msra.mxu0 0.0
        %804 = vmatpush.msra.mxu0 0.0
        %805 = vmatpush.msra.mxu0 0.0
        %806 = vmatpush.msra.mxu0 0.0
        %807 = vmatpush.msra.mxu0 0.0
        %808 = vmatpush.msra.mxu0 0.0
        %809 = vmatpush.msra.mxu0 0.0
        %810 = vmatpush.msra.mxu0 0.0
        %811 = vmatpush.msra.mxu0 0.0
        %812 = vmatpush.msra.mxu0 %v471
        %813 = vmatpush.msra.mxu0 %v463
        %814 = vmatpush.msra.mxu0 %v455
        %815 = vmatpush.msra.mxu0 %v447
        %816 = vmatmul.f32.gmra.mxu0 %v531
        %v817 = vpop.f32.mrf.mxu0
        %v818 = vadd.f32 %v492, %v817
        %819 = vmatmul.f32.gmra.mxu0 %v534
        %v820 = vpop.f32.mrf.mxu0
        %v821 = vadd.f32 %v497, %v820
        %822 = vmatmul.f32.gmra.mxu0 %v537
        %v823 = vpop.f32.mrf.mxu0
        %v824 = vadd.f32 %v502, %v823
        %825 = vmatmul.f32.gmra.mxu0 %v540
        %v826 = vpop.f32.mrf.mxu0
        %v827 = vadd.f32 %v507, %v826
        %828 = vmatmul.f32.gmra.mxu0 %v543
        %v829 = vpop.f32.mrf.mxu0
        %v830 = vadd.f32 %v512, %v829
        %831 = vmatmul.f32.gmra.mxu0 %v546
        %v832 = vpop.f32.mrf.mxu0
        %v833 = vadd.f32 %v517, %v832
        %834 = vmatmul.f32.gmra.mxu0 %v549
        %v835 = vpop.f32.mrf.mxu0
        %v836 = vadd.f32 %v522, %v835
        %837 = vmatmul.f32.gmra.mxu0 %v552
        %v838 = vpop.f32.mrf.mxu0
        %v839 = vadd.f32 %v527, %v838
        %840 = vdwg.mxu0
        %841 = vmatpush.msra.mxu0 0.0
        %842 = vmatpush.msra.mxu0 0.0
        %843 = vmatpush.msra.mxu0 0.0
        %844 = vmatpush.msra.mxu0 0.0
        %845 = vmatpush.msra.mxu0 0.0
        %846 = vmatpush.msra.mxu0 0.0
        %847 = vmatpush.msra.mxu0 0.0
        %848 = vmatpush.msra.mxu0 0.0
        %849 = vmatpush.msra.mxu0 0.0
        %850 = vmatpush.msra.mxu0 0.0
        %851 = vmatpush.msra.mxu0 0.0
        %852 = vmatpush.msra.mxu0 0.0
        %853 = vmatpush.msra.mxu0 %v472
        %854 = vmatpush.msra.mxu0 %v464
        %855 = vmatpush.msra.mxu0 %v456
        %856 = vmatpush.msra.mxu0 %v448
        %857 = vmatmul.f32.gmra.mxu0 %v531
        %v858 = vpop.f32.mrf.mxu0
        %v859 = vadd.f32 %v492, %v858
        %860 = vmatmul.f32.gmra.mxu0 %v534
        %v861 = vpop.f32.mrf.mxu0
        %v862 = vadd.f32 %v497, %v861
        %863 = vmatmul.f32.gmra.mxu0 %v537
        %v864 = vpop.f32.mrf.mxu0
        %v865 = vadd.f32 %v502, %v864
        %866 = vmatmul.f32.gmra.mxu0 %v540
        %v867 = vpop.f32.mrf.mxu0
        %v868 = vadd.f32 %v507, %v867
        %869 = vmatmul.f32.gmra.mxu0 %v543
        %v870 = vpop.f32.mrf.mxu0
        %v871 = vadd.f32 %v512, %v870
        %872 = vmatmul.f32.gmra.mxu0 %v546
        %v873 = vpop.f32.mrf.mxu0
        %v874 = vadd.f32 %v517, %v873
        %875 = vmatmul.f32.gmra.mxu0 %v549
        %v876 = vpop.f32.mrf.mxu0
        %v877 = vadd.f32 %v522, %v876
        %878 = vmatmul.f32.gmra.mxu0 %v552
        %v879 = vpop.f32.mrf.mxu0
        %v880 = vadd.f32 %v527, %v879
        %881 = vdwg.mxu0
        %v882 = vmul.f32 %v572, 0.05
        %v883 = vmul.f32 %v613, 0.05
        %v884 = vmul.f32 %v654, 0.05
        %v885 = vmul.f32 %v695, 0.05
        %v886 = vmul.f32 %v736, 0.05
        %v887 = vmul.f32 %v777, 0.05
        %v888 = vmul.f32 %v818, 0.05
        %v889 = vmul.f32 %v859, 0.05
        %v890 = vmul.f32 %v575, 0.05
        %v891 = vmul.f32 %v616, 0.05
        %v892 = vmul.f32 %v657, 0.05
        %v893 = vmul.f32 %v698, 0.05
        %v894 = vmul.f32 %v739, 0.05
        %v895 = vmul.f32 %v780, 0.05
        %v896 = vmul.f32 %v821, 0.05
        %v897 = vmul.f32 %v862, 0.05
        %v898 = vmul.f32 %v578, 0.05
        %v899 = vmul.f32 %v619, 0.05
        %v900 = vmul.f32 %v660, 0.05
        %v901 = vmul.f32 %v701, 0.05
        %v902 = vmul.f32 %v742, 0.05
        %v903 = vmul.f32 %v783, 0.05
        %v904 = vmul.f32 %v824, 0.05
        %v905 = vmul.f32 %v865, 0.05
        %v906 = vmul.f32 %v581, 0.05
        %v907 = vmul.f32 %v622, 0.05
        %v908 = vmul.f32 %v663, 0.05
        %v909 = vmul.f32 %v704, 0.05
        %v910 = vmul.f32 %v745, 0.05
        %v911 = vmul.f32 %v786, 0.05
        %v912 = vmul.f32 %v827, 0.05
        %v913 = vmul.f32 %v868, 0.05
        %v914 = vmul.f32 %v584, 0.05
        %v915 = vmul.f32 %v625, 0.05
        %v916 = vmul.f32 %v666, 0.05
        %v917 = vmul.f32 %v707, 0.05
        %v918 = vmul.f32 %v748, 0.05
        %v919 = vmul.f32 %v789, 0.05
        %v920 = vmul.f32 %v830, 0.05
        %v921 = vmul.f32 %v871, 0.05
        %v922 = vmul.f32 %v587, 0.05
        %v923 = vmul.f32 %v628, 0.05
        %v924 = vmul.f32 %v669, 0.05
        %v925 = vmul.f32 %v710, 0.05
        %v926 = vmul.f32 %v751, 0.05
        %v927 = vmul.f32 %v792, 0.05
        %v928 = vmul.f32 %v833, 0.05
        %v929 = vmul.f32 %v874, 0.05
        %v930 = vmul.f32 %v590, 0.05
        %v931 = vmul.f32 %v631, 0.05
        %v932 = vmul.f32 %v672, 0.05
        %v933 = vmul.f32 %v713, 0.05
        %v934 = vmul.f32 %v754, 0.05
        %v935 = vmul.f32 %v795, 0.05
        %v936 = vmul.f32 %v836, 0.05
        %v937 = vmul.f32 %v877, 0.05
        %v938 = vmul.f32 %v593, 0.05
        %v939 = vmul.f32 %v634, 0.05
        %v940 = vmul.f32 %v675, 0.05
        %v941 = vmul.f32 %v716, 0.05
        %v942 = vmul.f32 %v757, 0.05
        %v943 = vmul.f32 %v798, 0.05
        %v944 = vmul.f32 %v839, 0.05
        %v945 = vmul.f32 %v880, 0.05
        %v946 = vmax.f32 %v572, %v882
        %v947 = vmax.f32 %v613, %v883
        %v948 = vmax.f32 %v654, %v884
        %v949 = vmax.f32 %v695, %v885
        %v950 = vmax.f32 %v736, %v886
        %v951 = vmax.f32 %v777, %v887
        %v952 = vmax.f32 %v818, %v888
        %v953 = vmax.f32 %v859, %v889
        %v954 = vmax.f32 %v575, %v890
        %v955 = vmax.f32 %v616, %v891
        %v956 = vmax.f32 %v657, %v892
        %v957 = vmax.f32 %v698, %v893
        %v958 = vmax.f32 %v739, %v894
        %v959 = vmax.f32 %v780, %v895
        %v960 = vmax.f32 %v821, %v896
        %v961 = vmax.f32 %v862, %v897
        %v962 = vmax.f32 %v578, %v898
        %v963 = vmax.f32 %v619, %v899
        %v964 = vmax.f32 %v660, %v900
        %v965 = vmax.f32 %v701, %v901
        %v966 = vmax.f32 %v742, %v902
        %v967 = vmax.f32 %v783, %v903
        %v968 = vmax.f32 %v824, %v904
        %v969 = vmax.f32 %v865, %v905
        %v970 = vmax.f32 %v581, %v906
        %v971 = vmax.f32 %v622, %v907
        %v972 = vmax.f32 %v663, %v908
        %v973 = vmax.f32 %v704, %v909
        %v974 = vmax.f32 %v745, %v910
        %v975 = vmax.f32 %v786, %v911
        %v976 = vmax.f32 %v827, %v912
        %v977 = vmax.f32 %v868, %v913
        %v978 = vmax.f32 %v584, %v914
        %v979 = vmax.f32 %v625, %v915
        %v980 = vmax.f32 %v666, %v916
        %v981 = vmax.f32 %v707, %v917
        %v982 = vmax.f32 %v748, %v918
        %v983 = vmax.f32 %v789, %v919
        %v984 = vmax.f32 %v830, %v920
        %v985 = vmax.f32 %v871, %v921
        %v986 = vmax.f32 %v587, %v922
        %v987 = vmax.f32 %v628, %v923
        %v988 = vmax.f32 %v669, %v924
        %v989 = vmax.f32 %v710, %v925
        %v990 = vmax.f32 %v751, %v926
        %v991 = vmax.f32 %v792, %v927
        %v992 = vmax.f32 %v833, %v928
        %v993 = vmax.f32 %v874, %v929
        %v994 = vmax.f32 %v590, %v930
        %v995 = vmax.f32 %v631, %v931
        %v996 = vmax.f32 %v672, %v932
        %v997 = vmax.f32 %v713, %v933
        %v998 = vmax.f32 %v754, %v934
        %v999 = vmax.f32 %v795, %v935
        %v1000 = vmax.f32 %v836, %v936
        %v1001 = vmax.f32 %v877, %v937
        %v1002 = vmax.f32 %v593, %v938
        %v1003 = vmax.f32 %v634, %v939
        %v1004 = vmax.f32 %v675, %v940
        %v1005 = vmax.f32 %v716, %v941
        %v1006 = vmax.f32 %v757, %v942
        %v1007 = vmax.f32 %v798, %v943
        %v1008 = vmax.f32 %v839, %v944
        %v1009 = vmax.f32 %v880, %v945
        %v1010 = vld [vmem:[%s5] sm:$0x1]
        %v1011 = vld [vmem:[#allocation2] sm:$0x1]
        %v1012 = vperm.slane %v1010, 0
        %v1013 = vlaneseq
        %v1014 = vshrl.u32 %v1013, 7
        %1016 = vset.pattern.permute.xlu0 %v1014
        %1017 = vperm.xlu0 %1016, %v1012
        %v1018 = vpop.permute.xlu0 %1017
        %v1019 = vlaneseq
        %v1020 = vshrl.u32 %v1019, 7
        %v1021 = vadd.s32 %v1020, 8
        %1022 = vset.pattern.permute.xlu0 %v1021
        %1023 = vperm.xlu0 %1022, %v1012
        %v1024 = vpop.permute.xlu0 %1023
        %v1025 = vlaneseq
        %v1026 = vshrl.u32 %v1025, 7
        %v1027 = vadd.s32 %v1026, 16
        %1028 = vset.pattern.permute.xlu0 %v1027
        %1029 = vperm.xlu0 %1028, %v1012
        %v1030 = vpop.permute.xlu0 %1029
        %v1031 = vlaneseq
        %v1032 = vshrl.u32 %v1031, 7
        %v1033 = vadd.s32 %v1032, 24
        %1034 = vset.pattern.permute.xlu0 %v1033
        %1035 = vperm.xlu0 %1034, %v1012
        %v1036 = vpop.permute.xlu0 %1035
        %v1037 = vlaneseq
        %v1038 = vshrl.u32 %v1037, 7
        %v1039 = vadd.s32 %v1038, 32
        %1040 = vset.pattern.permute.xlu0 %v1039
        %1041 = vperm.xlu0 %1040, %v1012
        %v1042 = vpop.permute.xlu0 %1041
        %v1043 = vlaneseq
        %v1044 = vshrl.u32 %v1043, 7
        %v1045 = vadd.s32 %v1044, 40
        %1046 = vset.pattern.permute.xlu0 %v1045
        %1047 = vperm.xlu0 %1046, %v1012
        %v1048 = vpop.permute.xlu0 %1047
        %v1049 = vlaneseq
        %v1050 = vshrl.u32 %v1049, 7
        %v1051 = vadd.s32 %v1050, 48
        %1052 = vset.pattern.permute.xlu0 %v1051
        %1053 = vperm.xlu0 %1052, %v1012
        %v1054 = vpop.permute.xlu0 %1053
        %v1055 = vlaneseq
        %v1056 = vshrl.u32 %v1055, 7
        %v1057 = vadd.s32 %v1056, 56
        %1058 = vset.pattern.permute.xlu0 %v1057
        %1059 = vperm.xlu0 %1058, %v1012
        %v1060 = vpop.permute.xlu0 %1059
        %v1061 = vmul.f32 %v1018, %v946
        %v1062 = vmul.f32 %v1018, %v947
        %v1063 = vmul.f32 %v1018, %v948
        %v1064 = vmul.f32 %v1018, %v949
        %v1065 = vmul.f32 %v1018, %v950
        %v1066 = vmul.f32 %v1018, %v951
        %v1067 = vmul.f32 %v1018, %v952
        %v1068 = vmul.f32 %v1018, %v953
        %v1069 = vmul.f32 %v1024, %v954
        %v1070 = vmul.f32 %v1024, %v955
        %v1071 = vmul.f32 %v1024, %v956
        %v1072 = vmul.f32 %v1024, %v957
        %v1073 = vmul.f32 %v1024, %v958
        %v1074 = vmul.f32 %v1024, %v959
        %v1075 = vmul.f32 %v1024, %v960
        %v1076 = vmul.f32 %v1024, %v961
        %v1077 = vmul.f32 %v1030, %v962
        %v1078 = vmul.f32 %v1030, %v963
        %v1079 = vmul.f32 %v1030, %v964
        %v1080 = vmul.f32 %v1030, %v965
        %v1081 = vmul.f32 %v1030, %v966
        %v1082 = vmul.f32 %v1030, %v967
        %v1083 = vmul.f32 %v1030, %v968
        %v1084 = vmul.f32 %v1030, %v969
        %v1085 = vmul.f32 %v1036, %v970
        %v1086 = vmul.f32 %v1036, %v971
        %v1087 = vmul.f32 %v1036, %v972
        %v1088 = vmul.f32 %v1036, %v973
        %v1089 = vmul.f32 %v1036, %v974
        %v1090 = vmul.f32 %v1036, %v975
        %v1091 = vmul.f32 %v1036, %v976
        %v1092 = vmul.f32 %v1036, %v977
        %v1093 = vmul.f32 %v1042, %v978
        %v1094 = vmul.f32 %v1042, %v979
        %v1095 = vmul.f32 %v1042, %v980
        %v1096 = vmul.f32 %v1042, %v981
        %v1097 = vmul.f32 %v1042, %v982
        %v1098 = vmul.f32 %v1042, %v983
        %v1099 = vmul.f32 %v1042, %v984
        %v1100 = vmul.f32 %v1042, %v985
        %v1101 = vmul.f32 %v1048, %v986
        %v1102 = vmul.f32 %v1048, %v987
        %v1103 = vmul.f32 %v1048, %v988
        %v1104 = vmul.f32 %v1048, %v989
        %v1105 = vmul.f32 %v1048, %v990
        %v1106 = vmul.f32 %v1048, %v991
        %v1107 = vmul.f32 %v1048, %v992
        %v1108 = vmul.f32 %v1048, %v993
        %v1109 = vmul.f32 %v1054, %v994
        %v1110 = vmul.f32 %v1054, %v995
        %v1111 = vmul.f32 %v1054, %v996
        %v1112 = vmul.f32 %v1054, %v997
        %v1113 = vmul.f32 %v1054, %v998
        %v1114 = vmul.f32 %v1054, %v999
        %v1115 = vmul.f32 %v1054, %v1000
        %v1116 = vmul.f32 %v1054, %v1001
        %v1117 = vmul.f32 %v1060, %v1002
        %v1118 = vmul.f32 %v1060, %v1003
        %v1119 = vmul.f32 %v1060, %v1004
        %v1120 = vmul.f32 %v1060, %v1005
        %v1121 = vmul.f32 %v1060, %v1006
        %v1122 = vmul.f32 %v1060, %v1007
        %v1123 = vmul.f32 %v1060, %v1008
        %v1124 = vmul.f32 %v1060, %v1009
        %v1125 = vadd.f32 %v1061, %v1069
        %v1126 = vadd.f32 %v1125, %v1077
        %v1127 = vadd.f32 %v1126, %v1085
        %v1128 = vadd.f32 %v1127, %v1093
        %v1129 = vadd.f32 %v1128, %v1101
        %v1130 = vadd.f32 %v1129, %v1109
        %v1131 = vadd.f32 %v1130, %v1117
        %v1132 = vrot.slane %v1131, 4
        %v1133 = vadd.f32 %v1131, %v1132
        %v1134 = vrot.slane %v1133, 2
        %v1135 = vadd.f32 %v1133, %v1134
        %v1136 = vrot.slane %v1135, 1
        %v1137 = vadd.f32 %v1135, %v1136
        %v1138 = vadd.f32 %v1062, %v1070
        %v1139 = vadd.f32 %v1138, %v1078
        %v1140 = vadd.f32 %v1139, %v1086
        %v1141 = vadd.f32 %v1140, %v1094
        %v1142 = vadd.f32 %v1141, %v1102
        %v1143 = vadd.f32 %v1142, %v1110
        %v1144 = vadd.f32 %v1143, %v1118
        %v1145 = vrot.slane %v1144, 4
        %v1146 = vadd.f32 %v1144, %v1145
        %v1147 = vrot.slane %v1146, 2
        %v1148 = vadd.f32 %v1146, %v1147
        %v1149 = vrot.slane %v1148, 1
        %v1150 = vadd.f32 %v1148, %v1149
        %v1151 = vadd.f32 %v1063, %v1071
        %v1152 = vadd.f32 %v1151, %v1079
        %v1153 = vadd.f32 %v1152, %v1087
        %v1154 = vadd.f32 %v1153, %v1095
        %v1155 = vadd.f32 %v1154, %v1103
        %v1156 = vadd.f32 %v1155, %v1111
        %v1157 = vadd.f32 %v1156, %v1119
        %v1158 = vrot.slane %v1157, 4
        %v1159 = vadd.f32 %v1157, %v1158
        %v1160 = vrot.slane %v1159, 2
        %v1161 = vadd.f32 %v1159, %v1160
        %v1162 = vrot.slane %v1161, 1
        %v1163 = vadd.f32 %v1161, %v1162
        %v1164 = vadd.f32 %v1064, %v1072
        %v1165 = vadd.f32 %v1164, %v1080
        %v1166 = vadd.f32 %v1165, %v1088
        %v1167 = vadd.f32 %v1166, %v1096
        %v1168 = vadd.f32 %v1167, %v1104
        %v1169 = vadd.f32 %v1168, %v1112
        %v1170 = vadd.f32 %v1169, %v1120
        %v1171 = vrot.slane %v1170, 4
        %v1172 = vadd.f32 %v1170, %v1171
        %v1173 = vrot.slane %v1172, 2
        %v1174 = vadd.f32 %v1172, %v1173
        %v1175 = vrot.slane %v1174, 1
        %v1176 = vadd.f32 %v1174, %v1175
        %v1177 = vadd.f32 %v1065, %v1073
        %v1178 = vadd.f32 %v1177, %v1081
        %v1179 = vadd.f32 %v1178, %v1089
        %v1180 = vadd.f32 %v1179, %v1097
        %v1181 = vadd.f32 %v1180, %v1105
        %v1182 = vadd.f32 %v1181, %v1113
        %v1183 = vadd.f32 %v1182, %v1121
        %v1184 = vrot.slane %v1183, 4
        %v1185 = vadd.f32 %v1183, %v1184
        %v1186 = vrot.slane %v1185, 2
        %v1187 = vadd.f32 %v1185, %v1186
        %v1188 = vrot.slane %v1187, 1
        %v1189 = vadd.f32 %v1187, %v1188
        %v1190 = vadd.f32 %v1066, %v1074
        %v1191 = vadd.f32 %v1190, %v1082
        %v1192 = vadd.f32 %v1191, %v1090
        %v1193 = vadd.f32 %v1192, %v1098
        %v1194 = vadd.f32 %v1193, %v1106
        %v1195 = vadd.f32 %v1194, %v1114
        %v1196 = vadd.f32 %v1195, %v1122
        %v1197 = vrot.slane %v1196, 4
        %v1198 = vadd.f32 %v1196, %v1197
        %v1199 = vrot.slane %v1198, 2
        %v1200 = vadd.f32 %v1198, %v1199
        %v1201 = vrot.slane %v1200, 1
        %v1202 = vadd.f32 %v1200, %v1201
        %v1203 = vadd.f32 %v1067, %v1075
        %v1204 = vadd.f32 %v1203, %v1083
        %v1205 = vadd.f32 %v1204, %v1091
        %v1206 = vadd.f32 %v1205, %v1099
        %v1207 = vadd.f32 %v1206, %v1107
        %v1208 = vadd.f32 %v1207, %v1115
        %v1209 = vadd.f32 %v1208, %v1123
        %v1210 = vrot.slane %v1209, 4
        %v1211 = vadd.f32 %v1209, %v1210
        %v1212 = vrot.slane %v1211, 2
        %v1213 = vadd.f32 %v1211, %v1212
        %v1214 = vrot.slane %v1213, 1
        %v1215 = vadd.f32 %v1213, %v1214
        %v1216 = vadd.f32 %v1068, %v1076
        %v1217 = vadd.f32 %v1216, %v1084
        %v1218 = vadd.f32 %v1217, %v1092
        %v1219 = vadd.f32 %v1218, %v1100
        %v1220 = vadd.f32 %v1219, %v1108
        %v1221 = vadd.f32 %v1220, %v1116
        %v1222 = vadd.f32 %v1221, %v1124
        %v1223 = vrot.slane %v1222, 4
        %v1224 = vadd.f32 %v1222, %v1223
        %v1225 = vrot.slane %v1224, 2
        %v1226 = vadd.f32 %v1224, %v1225
        %v1227 = vrot.slane %v1226, 1
        %v1228 = vadd.f32 %v1226, %v1227
        %1230 = vset.pattern.permute.xlu0 0
        %1231 = vperm.xlu0 %1230, %v1011
        %v1232 = vpop.permute.xlu0 %1231
        %v1234 = vperm.slane %v1232, 0
        %v1235 = vadd.f32 %v1137, %v1234
        %v1236 = vadd.f32 %v1150, %v1234
        %v1237 = vadd.f32 %v1163, %v1234
        %v1238 = vadd.f32 %v1176, %v1234
        %v1239 = vadd.f32 %v1189, %v1234
        %v1240 = vadd.f32 %v1202, %v1234
        %v1241 = vadd.f32 %v1215, %v1234
        %v1242 = vadd.f32 %v1228, %v1234
        %v1251 = vrot.slane %v1236, 7
        %v1252 = vrot.slane %v1237, 6
        %v1253 = vrot.slane %v1238, 5
        %v1254 = vrot.slane %v1239, 4
        %v1255 = vrot.slane %v1240, 3
        %v1256 = vrot.slane %v1241, 2
        %v1257 = vrot.slane %v1242, 1
        %vm1258 = vcmask 1040384
        %v1259 = vsel %vm1258, %v1235, %v1251
        %vm1260 = vcmask 1042434
        %v1261 = vsel %vm1260, %v1252, %v1253
        %vm1262 = vcmask 1041408
        %v1263 = vsel %vm1262, %v1259, %v1261
        %vm1264 = vcmask 1044484
        %v1265 = vsel %vm1264, %v1254, %v1255
        %vm1266 = vcmask 1046534
        %v1267 = vsel %vm1266, %v1256, %v1257
        %vm1268 = vcmask 1045508
        %v1269 = vsel %vm1268, %v1265, %v1267
        %vm1270 = vcmask 1043456
        %v1271 = vsel %vm1270, %v1263, %v1269
        %1273 = vst [vmem:[%s272] sm:$0xff] %v1271
        %s1274 = sand.u32 %s183, 1
        %s1275 = scalar_lea.sflag [#allocation4], %s1274
        %s1276 = sand.u32 %s183, 1
        %s1277 = smul.addr %s1276, 8
        %s1278 = scalar_lea.vmem [#allocation3], %s1277
        // Predicated region
        $region49: #{feature_transformer.1} parent=47 // pred_check
          %p1279 = pneg %p193
        $region50: #{feature_transformer.1} parent=47 // pred_check_branch
          %1281 = sbr.rel (%p1279) target = $region52
        $region51: #{feature_transformer.1} parent=47 // pred_region
          %s1282 = smul.u32 8, %s23
          %1284 = vsyncadd %s1275, 0
          %s1285 = scalar_lea.hbm %s7, %s1282
          %s1287 = sshll.u32 %s1278, 4
          %s1288 = int_to_ptr.vmem [resolvable:$true] %s1287
          %s1289 = sshll.u32 %s1285, 4
          %s1290 = int_to_ptr.hbm [resolvable:$true] %s1289
          %1292 = dma.vmem_to_hbm [thread:$0]  %s1288, 128, %s1290, %s1275
        $region52: #{feature_transformer.1} parent=47 // pred_fallthru
          _
      $region48: #{feature_transformer.1} parent=5 // pred_fallthru
        _
      %p1293 = scmp.le.s32.totalorder 2, %s18
      // Predicated region
      $region53: #{feature_transformer.1} parent=5 // pred_check
        %p1294 = pneg %p1293
      $region54: #{feature_transformer.1} parent=5 // pred_check_branch
        %1296 = sbr.rel (%p1294) target = $region56
      $region55: #{feature_transformer.1} parent=5 // pred_region
        %s1297 = ssub.s32 %s18, 2
        // Predicated region
        $region57: #{feature_transformer.1} parent=55 // pred_check
          %p1298 = pneg %p199
        $region58: #{feature_transformer.1} parent=55 // pred_check_branch
          %1300 = sbr.rel (%p1298) target = $region60
        $region59: #{feature_transformer.1} parent=55 // pred_region
          %s1301 = sand.u32 %s184, 1
          %s1302 = scalar_lea.sflag [#allocation4], %s1301
          %s1303 = sand.u32 %s184, 1
          %s1304 = smul.addr %s1303, 8
          %s1305 = scalar_lea.vmem [#allocation3], %s1304
          %1307 = dma.done %s1302, 128
        $region60: #{feature_transformer.1} parent=55 // pred_fallthru
          _
      $region56: #{feature_transformer.1} parent=5 // pred_fallthru
        _
    $region6: #{feature_transformer.1} parent=1 // loop_footer
      %s22 = sadd.s32 1, %s18
    $region7: #{feature_transformer.1} parent=1 // loop_footer_branch
      %17 = sbr.rel target = $region3
    $region8: #{feature_transformer.1} parent=1 // loop_exit
      _
    %1308 = vsyncpa [#allocation4], 1
    %s1309 = scalar_lea.sflag [#allocation4], 1
    %1310 = vsyncpa %s1309, 1

</llo_original>
